<compile_context>
chip_gen: v6e
topology: v6e:2x2x1
jax: 0.10.0
libtpu: 0.0.40
codegen_flags: <defaults>
</compile_context>

<pallas_src>
import jax
import jax.numpy as jnp
from jax.experimental import pallas as pl
from jax.experimental.pallas import tpu as pltpu


def _round_up(n, m):
    return ((n + m - 1) // m) * m


# --------------------------------------------------------------------------
# Kernel
# --------------------------------------------------------------------------
def _decoder_kernel(x_ref, w1_ref, c1_ref, w2_ref, c2_ref, out_ref):
    # layer 1: Linear + BN (scale folded into W, bias folded into c1) -> ReLU
    x = x_ref[...].astype(jnp.bfloat16)                                  # [tb, E]
    h = jnp.dot(x, w1_ref[...], preferred_element_type=jnp.float32)     # [tb, Ip] f32
    h = jnp.maximum(h + c1_ref[...], 0.0)                                # ReLU (Dropout = id in eval)

    # layer 2: Linear + BN (folded) -> Sigmoid (EUP tanh form)
    o = jnp.dot(h.astype(jnp.bfloat16), w2_ref[...],
                preferred_element_type=jnp.float32)                      # [tb, Op] f32
    z = o + c2_ref[...]
    out_ref[...] = (0.5 * (jnp.tanh(0.5 * z) + 1.0)).astype(out_ref.dtype)


# --------------------------------------------------------------------------
# VMEM / tile selection helpers
# --------------------------------------------------------------------------
def _vmem_capacity_bytes():
    try:
        info = pltpu.get_tpu_info()
        cap = getattr(info, "vmem_capacity_bytes", None)
        if cap:
            return int(cap)
    except Exception:
        pass
    return 64 << 20  # smallest physical VMEM across targets (v7x per-TC)


def _vmem_limit_bytes(tb, E, Ip, Op):
    # Conservative need: assume default double-buffering of every block.
    w_bytes = (E * Ip + Ip * Op) * 2              # bf16 weights
    vec_bytes = (Ip + Op) * 4                     # folded shift vectors (f32)
    io_bytes = tb * E * 4 + tb * Op * 4           # x tile (f32) + out tile (f32)
    inter_bytes = tb * Ip * 6 + tb * Op * 4 + tb * E * 2
    need = 2 * (w_bytes + vec_bytes + io_bytes) + inter_bytes + (4 << 20)
    cap = int(0.75 * _vmem_capacity_bytes())      # never the full physical VMEM
    return min(cap, max(need, 16 << 20))


def _pick_batch_tile(B, tb_max=512):
    """Multiple of 16, minimal last-tile waste, >=2 grid steps for large B (v7x)."""
    tb_max = max(16, (tb_max // 16) * 16)
    n_tiles = max(1, -(-B // tb_max))
    if B > 128 and n_tiles == 1:
        n_tiles = 2              # keep both v7x TensorCores busy
    tb = -(-B // n_tiles)
    return _round_up(tb, 16)


# --------------------------------------------------------------------------
# pallas_call wrapper
# --------------------------------------------------------------------------
def _run_pallas(x, params, tb):
    B, E = x.shape
    Ip = params["w1t"].shape[1]
    Op = params["w2t"].shape[1]
    grid = (pl.cdiv(B, tb),)

    # Advisory cost estimate for the XLA scheduler.
    flops = 2 * B * (E * Ip + Ip * Op)
    bytes_accessed = (B * E * 4                     # x (f32, unpadded)
                      + (E * Ip + Ip * Op) * 2      # weights (bf16)
                      + (Ip + Op) * 4               # folded shift vectors (f32)
                      + B * Op * 4)                 # output (f32)
    cost = pl.CostEstimate(flops=flops, transcendentals=B * Op,
                           bytes_accessed=bytes_accessed)

    vmem_limit = _vmem_limit_bytes(tb, E, Ip, Op)

    return pl.pallas_call(
        _decoder_kernel,
        out_shape=jax.ShapeDtypeStruct((B, Op), jnp.float32),
        grid_spec=pltpu.PrefetchScalarGridSpec(
            num_scalar_prefetch=0,
            grid=grid,
            in_specs=[
                pl.BlockSpec((tb, E), lambda i: (i, 0)),    # x tile (f32, full E extent)
                pl.BlockSpec((E, Ip), lambda i: (0, 0)),    # W1^T * bn1_scale (bf16)
                pl.BlockSpec((1, Ip), lambda i: (0, 0)),    # c1 (folded bias + BN shift)
                pl.BlockSpec((Ip, Op), lambda i: (0, 0)),   # W2^T * bn2_scale (bf16)
                pl.BlockSpec((1, Op), lambda i: (0, 0)),    # c2
            ],
            out_specs=pl.BlockSpec((tb, Op), lambda i: (i, 0)),
        ),
        compiler_params=pltpu.CompilerParams(
            dimension_semantics=("parallel",),
            vmem_limit_bytes=vmem_limit),
        cost_estimate=cost,
    )(x, params["w1t"], params["c1"], params["w2t"], params["c2"])


def decoder_forward(x, params, *, block_batch=512):
    """x: [B, E] float32. Returns [B, O] float32 (async; caller syncs)."""
    B, E = x.shape
    assert E == params["in_features"]
    tb = _pick_batch_tile(B, block_batch)
    out = _run_pallas(x.astype(jnp.float32), params, tb)
    return out[:, :params["out_features"]]


# --------------------------------------------------------------------------
# Parameter construction (synthetic, PyTorch layout) + host-side folding
# --------------------------------------------------------------------------
def make_raw_params(key, E, I, O):
    """PyTorch-layout f32 params: w[out,in], b[out], BN gamma/beta/mean/var."""
    ks = jax.random.split(key, 12)
    p = {}
    p["w1"] = jax.random.normal(ks[0], (I, E), jnp.float32) * 0.1
    p["b1"] = jax.random.normal(ks[1], (I,), jnp.float32) * 0.1
    p["g1"] = 1.0 + 0.1 * jax.random.normal(ks[2], (I,), jnp.float32)
    p["be1"] = 0.1 * jax.random.normal(ks[3], (I,), jnp.float32)
    p["m1"] = 0.05 * jax.random.normal(ks[4], (I,), jnp.float32)
    p["v1"] = jnp.abs(1.0 + 0.1 * jax.random.normal(ks[5], (I,), jnp.float32))
    p["w2"] = jax.random.normal(ks[6], (O, I), jnp.float32) * 0.1
    p["b2"] = jax.random.normal(ks[7], (O,), jnp.float32) * 0.1
    p["g2"] = 1.0 + 0.1 * jax.random.normal(ks[8], (O,), jnp.float32)
    p["be2"] = 0.1 * jax.random.normal(ks[9], (O,), jnp.float32)
    p["m2"] = 0.05 * jax.random.normal(ks[10], (O,), jnp.float32)
    p["v2"] = jnp.abs(1.0 + 0.1 * jax.random.normal(ks[11], (O,), jnp.float32))
    return p


def fold_and_pack(raw, eps=1e-5):
    """Fold bias+BN into (scale-in-weights, additive shift); pad lane dims to 128."""
    I, E = raw["w1"].shape
    O = raw["w2"].shape[0]
    Ip, Op = _round_up(I, 128), _round_up(O, 128)

    def fold(w, b, g, beta, mean, var):
        s = g / jnp.sqrt(var + eps)                 # BN scale per out-feature
        c = (b - mean) * s + beta                   # Linear bias folded into BN shift
        wts = (w.T * s[None, :]).astype(jnp.float32)  # fold scale into W^T columns (f32!)
        return wts, c

    w1t, c1 = fold(raw["w1"], raw["b1"], raw["g1"], raw["be1"], raw["m1"], raw["v1"])
    w2t, c2 = fold(raw["w2"], raw["b2"], raw["g2"], raw["be2"], raw["m2"], raw["v2"])

    def pad2(a, r, c):
        return jnp.zeros((r, c), jnp.float32).at[:a.shape[0], :a.shape[1]].set(a)

    def pad_row(v, c):
        return jnp.zeros((1, c), jnp.float32).at[0, :v.shape[0]].set(v)

    return {
        "w1t": pad2(w1t, E, Ip).astype(jnp.bfloat16),   # (E, Ip)  — E left unpadded
        "c1": pad_row(c1, Ip),
        "w2t": pad2(w2t, Ip, Op).astype(jnp.bfloat16),  # (Ip, Op)
        "c2": pad_row(c2, Op),
        "in_features": E, "out_features": O,
    }


# --------------------------------------------------------------------------
# References
# --------------------------------------------------------------------------
def _reference_torch(x, raw, eps=1e-5):
    """Exact eval-mode PyTorch semantics in f32 (unfolded, unquantized)."""
    h = x @ raw["w1"].T + raw["b1"]
    h = (h - raw["m1"]) / jnp.sqrt(raw["v1"] + eps) * raw["g1"] + raw["be1"]
    h = jnp.maximum(h, 0.0)                       # ReLU; Dropout is identity in eval
    o = h @ raw["w2"].T + raw["b2"]
    o = (o - raw["m2"]) / jnp.sqrt(raw["v2"] + eps) * raw["g2"] + raw["be2"]
    return jax.nn.sigmoid(o)


def _reference_folded(x, p):
    """Replicates the kernel's folded / bf16-quantized math (tight check)."""
    xq = x.astype(jnp.bfloat16).astype(jnp.float32)
    h = xq @ p["w1t"].astype(jnp.float32)
    h = jnp.maximum(h + p["c1"], 0.0)
    hq = h.astype(jnp.bfloat16).astype(jnp.float32)
    o = hq @ p["w2t"].astype(jnp.float32)
    o = jax.nn.sigmoid(o + p["c2"])
    return o[:, :p["out_features"]]


# --------------------------------------------------------------------------
if __name__ == "__main__":
    # Deliberately ragged / non-128-aligned small sizes to exercise partial tiles.
    B, E, I, O = 50, 20, 48, 10   # batch, encoding, intermediate, output

    key = jax.random.PRNGKey(0)
    kx, kp = jax.random.split(key)
    x = jax.random.normal(kx, (B, E), jnp.float32)

    raw = make_raw_params(kp, E, I, O)
    params = fold_and_pack(raw)

    out = jax.block_until_ready(decoder_forward(x, params))
    assert out.shape == (B, O)

    ref_tight = _reference_folded(x, params)       # same folded/bf16 math as kernel
    ref_exact = _reference_torch(x, raw)           # full-precision module semantics
    assert jnp.allclose(out, ref_tight, atol=2e-3), float(jnp.max(jnp.abs(out - ref_tight)))
    assert jnp.allclose(out, ref_exact, atol=1e-2), float(jnp.max(jnp.abs(out - ref_exact)))

    print("KERNEL_OK")
</pallas_src>

<mosaic_0001>
module attributes {stable_mosaic.version = 11 : i64} {
  func.func @_decoder_kernel(%arg0: i32, %arg1: memref<64x20xf32, #tpu.memory_space<vmem>>, %arg2: memref<20x128xbf16, #tpu.memory_space<vmem>>, %arg3: memref<1x128xf32, #tpu.memory_space<vmem>>, %arg4: memref<128x128xbf16, #tpu.memory_space<vmem>>, %arg5: memref<1x128xf32, #tpu.memory_space<vmem>>, %arg6: memref<64x128xf32, #tpu.memory_space<vmem>>) attributes {dimension_semantics = [#tpu.dimension_semantics<parallel>], iteration_bounds = array<i64: 1>, scalar_prefetch = 0 : i64, scratch_operands = 0 : i64, tpu.core_type = #tpu.core_type<tc>, window_params = [{transform_indices = @transform_0, window_bounds = array<i64: 64, 20>}, {pipeline_mode = #tpu.pipeline_mode<synchronous>, transform_indices = @transform_1, window_bounds = array<i64: 20, 128>}, {pipeline_mode = #tpu.pipeline_mode<synchronous>, transform_indices = @transform_2, window_bounds = array<i64: 1, 128>}, {pipeline_mode = #tpu.pipeline_mode<synchronous>, transform_indices = @transform_3, window_bounds = array<i64: 128, 128>}, {pipeline_mode = #tpu.pipeline_mode<synchronous>, transform_indices = @transform_4, window_bounds = array<i64: 1, 128>}, {transform_indices = @transform_5, window_bounds = array<i64: 64, 128>}]} {
    %c0 = arith.constant 0 : index
    %c0_0 = arith.constant 0 : index
    %0 = vector.load %arg1[%c0, %c0_0] : memref<64x20xf32, #tpu.memory_space<vmem>>, vector<64x20xf32>
    %1 = arith.truncf %0 : vector<64x20xf32> to vector<64x20xbf16>
    %c0_1 = arith.constant 0 : index
    %c0_2 = arith.constant 0 : index
    %2 = vector.load %arg2[%c0_1, %c0_2] : memref<20x128xbf16, #tpu.memory_space<vmem>>, vector<20x128xbf16>
    %cst = arith.constant dense<0.000000e+00> : vector<64x128xf32>
    %3 = tpu.matmul %1, %2, %cst {dimension_numbers = #tpu.dot_dimension_numbers<[1], [0], [0], [1], [0, 0, 1, 1], [], []>} : vector<64x20xbf16>, vector<20x128xbf16>, vector<64x128xf32> -> vector<64x128xf32>
    %c0_3 = arith.constant 0 : index
    %c0_4 = arith.constant 0 : index
    %4 = vector.load %arg3[%c0_3, %c0_4] : memref<1x128xf32, #tpu.memory_space<vmem>>, vector<1x128xf32>
    %5 = vector.broadcast %4 : vector<1x128xf32> to vector<64x128xf32>
    %6 = arith.addf %3, %5 : vector<64x128xf32>
    %cst_5 = arith.constant 0.000000e+00 : f32
    %7 = vector.broadcast %cst_5 : f32 to vector<64x128xf32>
    %8 = arith.maximumf %6, %7 : vector<64x128xf32>
    %9 = arith.truncf %8 : vector<64x128xf32> to vector<64x128xbf16>
    %c0_6 = arith.constant 0 : index
    %c0_7 = arith.constant 0 : index
    %10 = vector.load %arg4[%c0_6, %c0_7] : memref<128x128xbf16, #tpu.memory_space<vmem>>, vector<128x128xbf16>
    %cst_8 = arith.constant dense<0.000000e+00> : vector<64x128xf32>
    %11 = tpu.matmul %9, %10, %cst_8 {dimension_numbers = #tpu.dot_dimension_numbers<[1], [0], [0], [1], [0, 0, 1, 1], [], []>} : vector<64x128xbf16>, vector<128x128xbf16>, vector<64x128xf32> -> vector<64x128xf32>
    %c0_9 = arith.constant 0 : index
    %c0_10 = arith.constant 0 : index
    %12 = vector.load %arg5[%c0_9, %c0_10] : memref<1x128xf32, #tpu.memory_space<vmem>>, vector<1x128xf32>
    %13 = vector.broadcast %12 : vector<1x128xf32> to vector<64x128xf32>
    %14 = arith.addf %11, %13 : vector<64x128xf32>
    %cst_11 = arith.constant 5.000000e-01 : f32
    %15 = vector.broadcast %cst_11 : f32 to vector<64x128xf32>
    %16 = arith.mulf %15, %14 : vector<64x128xf32>
    %17 = math.tanh %16 : vector<64x128xf32>
    %cst_12 = arith.constant 1.000000e+00 : f32
    %18 = vector.broadcast %cst_12 : f32 to vector<64x128xf32>
    %19 = arith.addf %17, %18 : vector<64x128xf32>
    %cst_13 = arith.constant 5.000000e-01 : f32
    %20 = vector.broadcast %cst_13 : f32 to vector<64x128xf32>
    %21 = arith.mulf %20, %19 : vector<64x128xf32>
    %c0_14 = arith.constant 0 : index
    %c0_15 = arith.constant 0 : index
    %22 = vector.load %arg6[%c0_14, %c0_15] : memref<64x128xf32, #tpu.memory_space<vmem>>, vector<64x128xf32>
    tpu.vector_store %arg6[%c0_14, %c0_15], %21 {strides = array<i32>} : memref<64x128xf32, #tpu.memory_space<vmem>>, vector<64x128xf32>,
    return
  }
  func.func @transform_0(%arg0: i32) -> (i32, i32) {
    %c0_i32 = arith.constant 0 : i32
    %c0_i32_0 = arith.constant 0 : i32
    return %arg0, %c0_i32 : i32, i32
  }
  func.func @transform_1(%arg0: i32) -> (i32, i32) {
    %c0_i32 = arith.constant 0 : i32
    %c0_i32_0 = arith.constant 0 : i32
    %c0_i32_1 = arith.constant 0 : i32
    return %c0_i32, %c0_i32_0 : i32, i32
  }
  func.func @transform_2(%arg0: i32) -> (i32, i32) {
    %c0_i32 = arith.constant 0 : i32
    %c0_i32_0 = arith.constant 0 : i32
    %c0_i32_1 = arith.constant 0 : i32
    return %c0_i32, %c0_i32_0 : i32, i32
  }
  func.func @transform_3(%arg0: i32) -> (i32, i32) {
    %c0_i32 = arith.constant 0 : i32
    %c0_i32_0 = arith.constant 0 : i32
    %c0_i32_1 = arith.constant 0 : i32
    return %c0_i32, %c0_i32_0 : i32, i32
  }
  func.func @transform_4(%arg0: i32) -> (i32, i32) {
    %c0_i32 = arith.constant 0 : i32
    %c0_i32_0 = arith.constant 0 : i32
    %c0_i32_1 = arith.constant 0 : i32
    return %c0_i32, %c0_i32_0 : i32, i32
  }
  func.func @transform_5(%arg0: i32) -> (i32, i32) {
    %c0_i32 = arith.constant 0 : i32
    %c0_i32_0 = arith.constant 0 : i32
    return %arg0, %c0_i32 : i32, i32
  }
}

</mosaic_0001>

<llo_original>
// kernel: tpu_custom_call.1
$region0: #{tpu_custom_call.1}
  #allocation0 [shape = 'u32[]', space=smem, size = 0x4, offset = 0x4, fixed_abs, tag = 'smem constant byte address 0x4 - core index']
  #allocation1 [shape = 'u32[144,128]{1,0:T(1,128)}', space=vmem, size = 0x12000, scoped, tag = 'internal scratch']
  %s0 = inlined_call_operand.vmem [shape: f32[50,20], index: 0, kind: input, shape index: {}]
  %s1 = inlined_call_operand.vmem [shape: bf16[20,128], index: 1, kind: input, shape index: {}]
  %s2 = inlined_call_operand.vmem [shape: f32[1,128], index: 2, kind: input, shape index: {}]
  %s3 = inlined_call_operand.vmem [shape: bf16[128,128], index: 3, kind: input, shape index: {}]
  %s4 = inlined_call_operand.vmem [shape: f32[1,128], index: 4, kind: input, shape index: {}]
  %s5 = inlined_call_operand.hbm [shape: f32[50,128], index: 5, kind: output, shape index: {}]
  %s6 = sld [smem:[#allocation0]]
  $region30: #{tpu_custom_call.1} parent=0
    _
  %s8 = ssub.s32 1, %s6
  %s9 = scalar_select 0, %s8, %s6
  $region1: #{tpu_custom_call.1} parent=0
    #allocation2 [shape = 'u8[32768]{0}', space=vmem, size = 0x8000, scoped, tag = 'output window, operand 0, single buffered']
    #allocation3 [shape = 's32[1]{0}', space=sflag, size = 0x4, scoped, tag = 'scoped memory for tpu_custom_call.1']
    %10 = vsyncpa [#allocation3], 0
    // Predicated region
    $region2: #{tpu_custom_call.1} parent=1 // pred_check
      _
    $region3: #{tpu_custom_call.1} parent=1 // pred_check_branch
      %12 = sbr.rel (0) target = $region5
    $region4: #{tpu_custom_call.1} parent=1 // pred_region
      _
    $region5: #{tpu_custom_call.1} parent=1 // pred_fallthru
      _
    // Predicated region
    $region6: #{tpu_custom_call.1} parent=1 // pred_check
      _
    $region7: #{tpu_custom_call.1} parent=1 // pred_check_branch
      %14 = sbr.rel (0) target = $region9
    $region8: #{tpu_custom_call.1} parent=1 // pred_region
      _
    $region9: #{tpu_custom_call.1} parent=1 // pred_fallthru
      _
    // Predicated region
    $region10: #{tpu_custom_call.1} parent=1 // pred_check
      _
    $region11: #{tpu_custom_call.1} parent=1 // pred_check_branch
      %16 = sbr.rel (0) target = $region13
    $region12: #{tpu_custom_call.1} parent=1 // pred_region
      _
    $region13: #{tpu_custom_call.1} parent=1 // pred_fallthru
      _
    // Predicated region
    $region14: #{tpu_custom_call.1} parent=1 // pred_check
      _
    $region15: #{tpu_custom_call.1} parent=1 // pred_check_branch
      %18 = sbr.rel (0) target = $region17
    $region16: #{tpu_custom_call.1} parent=1 // pred_region
      _
    $region17: #{tpu_custom_call.1} parent=1 // pred_fallthru
      _
    // Predicated region
    $region18: #{tpu_custom_call.1} parent=1 // pred_check
      _
    $region19: #{tpu_custom_call.1} parent=1 // pred_check_branch
      %20 = sbr.rel (0) target = $region21
    $region20: #{tpu_custom_call.1} parent=1 // pred_region
      _
    $region21: #{tpu_custom_call.1} parent=1 // pred_fallthru
      _
    %v22 = vld [vmem:[%s0] sm:$0xff]
    %v23 = vld [vmem:[%s0 + $0x8] sm:$0xff]
    %v24 = vld [vmem:[%s0 + $0x10] sm:$0xff]
    %v25 = vld [vmem:[%s0 + $0x18] sm:$0xff]
    %v26 = vld [vmem:[%s0 + $0x20] sm:$0xff]
    %v27 = vld [vmem:[%s0 + $0x28] sm:$0xff]
    %v28 = vld [vmem:[%s0 + $0x30] sm:$0xff]
    %v29 = vld [vmem:[%s0 + $0x38] sm:$0xff]
    %v30 = vpack.c.bf16 %v23, %v22
    %v31 = vpack.c.bf16 %v25, %v24
    %v32 = vpack.c.bf16 %v27, %v26
    %v33 = vpack.c.bf16 %v29, %v28
    %v34 = vld [vmem:[%s1] sm:$0xf]
    %v35 = vld [vmem:[%s1 + $0x4] sm:$0xf]
    %v36 = vld [vmem:[%s1 + $0x8] sm:$0x3]
    %v37 = vld [vmem:[%s2] sm:$0x1]
    %v39 = vlaneseq
    %v40 = vshrl.u32 %v39, 7
    %v41 = vsub.s32 0, %v40
    %v42 = vrot.slane %v37, %v41
    %v47 = vunpack.c.l.b16 %v34
    %v48 = vunpack.c.l.b16 %v35
    %v49 = vunpack.c.l.b16 %v36
    %v50 = vpack.c.b16 %v48, %v47
    %v51 = vpack.c.b16 %v49, %v49
    %vm53 = vcmask 162816
    %v55 = vsel %vm53, %v30, 0
    %v58 = vsel %vm53, %v31, 0
    %v61 = vsel %vm53, %v32, 0
    %v64 = vsel %vm53, %v33, 0
    %vm66 = vcmask 1041408
    %v68 = vsel %vm66, %v51, 0
    %70 = vmatprep.subr.bf16.mxu0 0
    %71 = vmatpush1.bf16.msra.mxu0 0
    %72 = vmatprep.subr.bf16.mxu0 0
    %73 = vmatpush1.bf16.msra.mxu0 0
    %74 = vmatprep.subr.bf16.mxu0 0
    %75 = vmatpush1.bf16.msra.mxu0 0
    %76 = vmatprep.subr.bf16.mxu0 0
    %77 = vmatpush1.bf16.msra.mxu0 0
    %78 = vmatprep.subr.bf16.mxu0 0
    %79 = vmatpush1.bf16.msra.mxu0 0
    %80 = vmatprep.subr.bf16.mxu0 0
    %81 = vmatpush1.bf16.msra.mxu0 0
    %82 = vmatprep.subr.bf16.mxu0 0
    %83 = vmatpush1.bf16.msra.mxu0 %v68
    %84 = vmatprep.subr.bf16.mxu0 0
    %85 = vmatpush1.bf16.msra.mxu0 %v50
    %86 = vmatprep.subr.bf16.mxu0 0
    %87 = vmatpush2.bf16.msra.mxu0 0
    %88 = vmatprep.subr.bf16.mxu0 0
    %89 = vmatpush2.bf16.msra.mxu0 0
    %90 = vmatprep.subr.bf16.mxu0 0
    %91 = vmatpush2.bf16.msra.mxu0 0
    %92 = vmatprep.subr.bf16.mxu0 0
    %93 = vmatpush2.bf16.msra.mxu0 0
    %94 = vmatprep.subr.bf16.mxu0 0
    %95 = vmatpush2.bf16.msra.mxu0 0
    %96 = vmatprep.subr.bf16.mxu0 0
    %97 = vmatpush2.bf16.msra.mxu0 0
    %98 = vmatprep.subr.bf16.mxu0 0
    %99 = vmatpush2.bf16.msra.mxu0 0
    %100 = vmatprep.subr.bf16.mxu0 0
    %101 = vmatpush2.bf16.msra.mxu0 0
    %102 = vmatprep.mubr.bf16.mxu0 0
    %103 = vmatmul.mubr.bf16.gmra.mxu0 %v55
    %v104 = vpop.f32.mrf.mxu0
    %v105 = vadd.f32 %v42, %v104
    %v106 = vpop.f32.mrf.mxu0
    %v107 = vpop.f32.mrf.mxu0
    %v108 = vadd.f32 %v42, %v107
    %v109 = vpop.f32.mrf.mxu0
    %110 = vmatprep.mubr.bf16.mxu0 0
    %111 = vmatmul.mubr.bf16.gmra.mxu0 %v58
    %v112 = vpop.f32.mrf.mxu0
    %v113 = vadd.f32 %v42, %v112
    %v114 = vpop.f32.mrf.mxu0
    %v115 = vpop.f32.mrf.mxu0
    %v116 = vadd.f32 %v42, %v115
    %v117 = vpop.f32.mrf.mxu0
    %118 = vmatprep.mubr.bf16.mxu0 0
    %119 = vmatmul.mubr.bf16.gmra.mxu0 %v61
    %v120 = vpop.f32.mrf.mxu0
    %v121 = vadd.f32 %v42, %v120
    %v122 = vpop.f32.mrf.mxu0
    %v123 = vpop.f32.mrf.mxu0
    %v124 = vadd.f32 %v42, %v123
    %v125 = vpop.f32.mrf.mxu0
    %126 = vmatprep.mubr.bf16.mxu0 0
    %127 = vmatmul.mubr.bf16.gmra.mxu0 %v64
    %v128 = vpop.f32.mrf.mxu0
    %v129 = vadd.f32 %v42, %v128
    %v130 = vpop.f32.mrf.mxu0
    %v131 = vpop.f32.mrf.mxu0
    %v132 = vadd.f32 %v42, %v131
    %v133 = vpop.f32.mrf.mxu0
    %134 = vdwg.mxu0
    %v135 = vmax.f32 %v105, 0.0
    %v136 = vmax.f32 %v108, 0.0
    %v137 = vmax.f32 %v113, 0.0
    %v138 = vmax.f32 %v116, 0.0
    %v139 = vmax.f32 %v121, 0.0
    %v140 = vmax.f32 %v124, 0.0
    %v141 = vmax.f32 %v129, 0.0
    %v142 = vmax.f32 %v132, 0.0
    %v143 = vpack.c.bf16 %v136, %v135
    %v144 = vpack.c.bf16 %v138, %v137
    %v145 = vpack.c.bf16 %v140, %v139
    %v146 = vpack.c.bf16 %v142, %v141
    %v147 = vld [vmem:[%s3] sm:$0xf]
    %v148 = vld [vmem:[%s3 + $0x4] sm:$0xf]
    %v149 = vld [vmem:[%s3 + $0x8] sm:$0xf]
    %v150 = vld [vmem:[%s3 + $0xc] sm:$0xf]
    %v151 = vld [vmem:[%s3 + $0x10] sm:$0xf]
    %v152 = vld [vmem:[%s3 + $0x14] sm:$0xf]
    %v153 = vld [vmem:[%s3 + $0x18] sm:$0xf]
    %v154 = vld [vmem:[%s3 + $0x1c] sm:$0xf]
    %v155 = vld [vmem:[%s3 + $0x20] sm:$0xf]
    %v156 = vld [vmem:[%s3 + $0x24] sm:$0xf]
    %v157 = vld [vmem:[%s3 + $0x28] sm:$0xf]
    %v158 = vld [vmem:[%s3 + $0x2c] sm:$0xf]
    %v159 = vld [vmem:[%s3 + $0x30] sm:$0xf]
    %v160 = vld [vmem:[%s3 + $0x34] sm:$0xf]
    %v161 = vld [vmem:[%s3 + $0x38] sm:$0xf]
    %v162 = vld [vmem:[%s3 + $0x3c] sm:$0xf]
    %v163 = vld [vmem:[%s4] sm:$0x1]
    %v165 = vlaneseq
    %v166 = vshrl.u32 %v165, 7
    %v167 = vsub.s32 0, %v166
    %v168 = vrot.slane %v163, %v167
    %v186 = vunpack.c.l.b16 %v147
    %v187 = vunpack.c.l.b16 %v148
    %v188 = vunpack.c.l.b16 %v149
    %v189 = vunpack.c.l.b16 %v150
    %v190 = vunpack.c.l.b16 %v151
    %v191 = vunpack.c.l.b16 %v152
    %v192 = vunpack.c.l.b16 %v153
    %v193 = vunpack.c.l.b16 %v154
    %v194 = vunpack.c.l.b16 %v155
    %v195 = vunpack.c.l.b16 %v156
    %v196 = vunpack.c.l.b16 %v157
    %v197 = vunpack.c.l.b16 %v158
    %v198 = vunpack.c.l.b16 %v159
    %v199 = vunpack.c.l.b16 %v160
    %v200 = vunpack.c.l.b16 %v161
    %v201 = vunpack.c.l.b16 %v162
    %v202 = vpack.c.b16 %v187, %v186
    %v203 = vpack.c.b16 %v189, %v188
    %v204 = vpack.c.b16 %v191, %v190
    %v205 = vpack.c.b16 %v193, %v192
    %v206 = vpack.c.b16 %v195, %v194
    %v207 = vpack.c.b16 %v197, %v196
    %v208 = vpack.c.b16 %v199, %v198
    %v209 = vpack.c.b16 %v201, %v200
    %218 = vmatprep.subr.bf16.mxu0 0
    %219 = vmatpush1.bf16.msra.mxu0 %v209
    %220 = vmatprep.subr.bf16.mxu0 0
    %221 = vmatpush1.bf16.msra.mxu0 %v208
    %222 = vmatprep.subr.bf16.mxu0 0
    %223 = vmatpush1.bf16.msra.mxu0 %v207
    %224 = vmatprep.subr.bf16.mxu0 0
    %225 = vmatpush1.bf16.msra.mxu0 %v206
    %226 = vmatprep.subr.bf16.mxu0 0
    %227 = vmatpush1.bf16.msra.mxu0 %v205
    %228 = vmatprep.subr.bf16.mxu0 0
    %229 = vmatpush1.bf16.msra.mxu0 %v204
    %230 = vmatprep.subr.bf16.mxu0 0
    %231 = vmatpush1.bf16.msra.mxu0 %v203
    %232 = vmatprep.subr.bf16.mxu0 0
    %233 = vmatpush1.bf16.msra.mxu0 %v202
    %234 = vmatprep.subr.bf16.mxu0 0
    %235 = vmatpush2.bf16.msra.mxu0 0
    %236 = vmatprep.subr.bf16.mxu0 0
    %237 = vmatpush2.bf16.msra.mxu0 0
    %238 = vmatprep.subr.bf16.mxu0 0
    %239 = vmatpush2.bf16.msra.mxu0 0
    %240 = vmatprep.subr.bf16.mxu0 0
    %241 = vmatpush2.bf16.msra.mxu0 0
    %242 = vmatprep.subr.bf16.mxu0 0
    %243 = vmatpush2.bf16.msra.mxu0 0
    %244 = vmatprep.subr.bf16.mxu0 0
    %245 = vmatpush2.bf16.msra.mxu0 0
    %246 = vmatprep.subr.bf16.mxu0 0
    %247 = vmatpush2.bf16.msra.mxu0 0
    %248 = vmatprep.subr.bf16.mxu0 0
    %249 = vmatpush2.bf16.msra.mxu0 0
    %250 = vmatprep.mubr.bf16.mxu0 0
    %251 = vmatmul.mubr.bf16.gmra.mxu0 %v143
    %v252 = vpop.f32.mrf.mxu0
    %v253 = vadd.f32 %v168, %v252
    %v254 = vpop.f32.mrf.mxu0
    %v255 = vpop.f32.mrf.mxu0
    %v256 = vadd.f32 %v168, %v255
    %v257 = vpop.f32.mrf.mxu0
    %258 = vmatprep.mubr.bf16.mxu0 0
    %259 = vmatmul.mubr.bf16.gmra.mxu0 %v144
    %v260 = vpop.f32.mrf.mxu0
    %v261 = vadd.f32 %v168, %v260
    %v262 = vpop.f32.mrf.mxu0
    %v263 = vpop.f32.mrf.mxu0
    %v264 = vadd.f32 %v168, %v263
    %v265 = vpop.f32.mrf.mxu0
    %266 = vmatprep.mubr.bf16.mxu0 0
    %267 = vmatmul.mubr.bf16.gmra.mxu0 %v145
    %v268 = vpop.f32.mrf.mxu0
    %v269 = vadd.f32 %v168, %v268
    %v270 = vpop.f32.mrf.mxu0
    %v271 = vpop.f32.mrf.mxu0
    %v272 = vadd.f32 %v168, %v271
    %v273 = vpop.f32.mrf.mxu0
    %274 = vmatprep.mubr.bf16.mxu0 0
    %275 = vmatmul.mubr.bf16.gmra.mxu0 %v146
    %v276 = vpop.f32.mrf.mxu0
    %v277 = vadd.f32 %v168, %v276
    %v278 = vpop.f32.mrf.mxu0
    %v279 = vpop.f32.mrf.mxu0
    %v280 = vadd.f32 %v168, %v279
    %v281 = vpop.f32.mrf.mxu0
    %282 = vdwg.mxu0
    %v283 = vmul.f32 %v253, 0.5
    %v284 = vmul.f32 %v256, 0.5
    %v285 = vmul.f32 %v261, 0.5
    %v286 = vmul.f32 %v264, 0.5
    %v287 = vmul.f32 %v269, 0.5
    %v288 = vmul.f32 %v272, 0.5
    %v289 = vmul.f32 %v277, 0.5
    %v290 = vmul.f32 %v280, 0.5
    %v291 = vtanh.pop %v283
    %v292 = vtanh.pop %v284
    %v293 = vtanh.pop %v285
    %v294 = vtanh.pop %v286
    %v295 = vtanh.pop %v287
    %v296 = vtanh.pop %v288
    %v297 = vtanh.pop %v289
    %v298 = vtanh.pop %v290
    %v299 = vadd.f32 %v291, 1.0
    %v300 = vadd.f32 %v292, 1.0
    %v301 = vadd.f32 %v293, 1.0
    %v302 = vadd.f32 %v294, 1.0
    %v303 = vadd.f32 %v295, 1.0
    %v304 = vadd.f32 %v296, 1.0
    %v305 = vadd.f32 %v297, 1.0
    %v306 = vadd.f32 %v298, 1.0
    %v307 = vmul.f32 %v299, 0.5
    %v308 = vmul.f32 %v300, 0.5
    %v309 = vmul.f32 %v301, 0.5
    %v310 = vmul.f32 %v302, 0.5
    %v311 = vmul.f32 %v303, 0.5
    %v312 = vmul.f32 %v304, 0.5
    %v313 = vmul.f32 %v305, 0.5
    %v314 = vmul.f32 %v306, 0.5
    %315 = vst [vmem:[#allocation2] sm:$0xff] %v307
    %316 = vst [vmem:[#allocation2 + $0x8] sm:$0xff] %v308
    %317 = vst [vmem:[#allocation2 + $0x10] sm:$0xff] %v309
    %318 = vst [vmem:[#allocation2 + $0x18] sm:$0xff] %v310
    %319 = vst [vmem:[#allocation2 + $0x20] sm:$0xff] %v311
    %320 = vst [vmem:[#allocation2 + $0x28] sm:$0xff] %v312
    %321 = vst [vmem:[#allocation2 + $0x30] sm:$0xff] %v313
    %322 = vst [vmem:[#allocation2 + $0x38] sm:$0xff] %v314
    // Predicated region
    $region22: #{tpu_custom_call.1} parent=1 // pred_check
      _
    $region23: #{tpu_custom_call.1} parent=1 // pred_check_branch
      %324 = sbr.rel (0) target = $region25
    $region24: #{tpu_custom_call.1} parent=1 // pred_region
      %s326 = ssub.s32 1024, 896
      %327 = vsyncadd [#allocation3], %s326
      %s328 = sshll.u32 [#allocation2], 4
      %s329 = int_to_ptr.vmem [resolvable:$true] %s328
      %334 = dma.vmem_to_hbm [thread:$0]  %s329, 896, %s5, [#allocation3], 128, 128, 8
    $region25: #{tpu_custom_call.1} parent=1 // pred_fallthru
      _
    // Predicated region
    $region26: #{tpu_custom_call.1} parent=1 // pred_check
      _
    $region27: #{tpu_custom_call.1} parent=1 // pred_check_branch
      %336 = sbr.rel (0) target = $region29
    $region28: #{tpu_custom_call.1} parent=1 // pred_region
      %337 = dma.done [#allocation3], 1024
    $region29: #{tpu_custom_call.1} parent=1 // pred_fallthru
      _
    %338 = vsyncpa [#allocation3], 1

</llo_original>
